<compile_context>
chip_gen: v6e
topology: v6e:2x2x1
jax: 0.10.0
libtpu: 0.0.40
codegen_flags: <defaults>
</compile_context>

<pallas_src>
import functools

import jax
import jax.numpy as jnp
from jax import lax
from jax.experimental import pallas as pl
from jax.experimental.pallas import tpu as pltpu


LANE = 128


def _round_up(x, m):
    return ((x + m - 1) // m) * m


def _gemm_bias_act_kernel(x_ref, w_ref, b_ref, o_ref, *, cout, relu):
    """One (TM, K_pad) im2col tile -> (TM, Cout) output tile.

    x_ref : (TM, K_pad)        im2col slab tile (compute dtype)
    w_ref : (K_pad, Cout_pad)  BN-scale-folded weight, lane-dense, VMEM-resident
    b_ref : (1,  Cout_pad)     folded BN / conv bias (f32)
    o_ref : (TM, Cout)         output tile (true Cout; no channel padding in HBM)
    """
    acc = jnp.dot(x_ref[...], w_ref[...], preferred_element_type=jnp.float32)
    y = acc + b_ref[...]                      # epilogue strictly in f32
    if relu:
        y = jnp.maximum(y, 0.0)
    o_ref[...] = y[:, :cout].astype(o_ref.dtype)


@functools.partial(
    jax.jit,
    static_argnames=("stride", "padding", "relu", "bn", "eps", "compute_dtype", "tile_m"))
def _basic_conv_impl(x_nchw, conv_w, bn_gamma, bn_beta, bn_mean, bn_var, conv_bias, *,
                     stride, padding, relu, bn, eps, compute_dtype, tile_m):
    n, cin, h, w = x_nchw.shape
    cout, cin_w, kh, kw = conv_w.shape
    assert cin_w == cin, (cin_w, cin)
    h_out = (h + 2 * padding - kh) // stride + 1
    w_out = (w + 2 * padding - kw) // stride + 1
    assert h_out > 0 and w_out > 0, (h_out, w_out)

    out_dtype = x_nchw.dtype
    cdt = jnp.bfloat16 if compute_dtype is None else compute_dtype

    k = kh * kw * cin
    k_pad = _round_up(k, 8)                       # sublane-aligned K
    cout_pad = _round_up(cout, LANE)              # lane-dense weight / MXU N dim
    m_total = n * h_out * w_out

    # M tile: target ~1024 rows (K is tiny so the matmul is M-bound); cdiv-style grid
    # with zero-padded tail rows instead of requiring divisibility.
    tm = 1024 if tile_m is None else int(tile_m)
    tm = max(8, _round_up(min(tm, m_total), 8))
    tm_cap = max(8, ((8 << 20) // (cout_pad * 4)) // 8 * 8)   # cap f32 acc block ~8 MiB
    tm = min(tm, tm_cap)
    m_pad = _round_up(m_total, tm)
    n_m = m_pad // tm

    # ---- wrapper-side im2col (one fused XLA producer; see TODO at top for large images)
    x_nhwc = jnp.transpose(x_nchw, (0, 2, 3, 1)).astype(cdt)
    x_sp = jnp.pad(x_nhwc, ((0, 0), (padding, padding), (padding, padding), (0, 0)))
    patches = []
    for i in range(kh):
        for j in range(kw):
            patches.append(lax.slice(
                x_sp,
                (0, i, j, 0),
                (n, i + (h_out - 1) * stride + 1, j + (w_out - 1) * stride + 1, cin),
                (1, stride, stride, 1)))
    x_col = jnp.concatenate(patches, axis=-1) if len(patches) > 1 else patches[0]
    x_col = x_col.reshape(m_total, k)
    x_col = jnp.pad(x_col, ((0, m_pad - m_total), (0, k_pad - k)))

    # ---- fold BN (inference semantics) + optional conv bias: scale -> weights, bias -> epilogue
    w_hwio = jnp.transpose(conv_w, (2, 3, 1, 0)).astype(jnp.float32)   # (KH,KW,Cin,Cout)
    if bn:
        scale = bn_gamma.astype(jnp.float32) * lax.rsqrt(bn_var.astype(jnp.float32) + eps)
        bias = bn_beta.astype(jnp.float32) - bn_mean.astype(jnp.float32) * scale
    else:
        scale = jnp.ones((cout,), jnp.float32)
        bias = jnp.zeros((cout,), jnp.float32)
    if conv_bias is not None:
        bias = bias + conv_bias.astype(jnp.float32) * scale
    w2d = (w_hwio * scale.reshape(1, 1, 1, cout)).reshape(k, cout)
    w2d = jnp.pad(w2d, ((0, k_pad - k), (0, cout_pad - cout))).astype(cdt)
    bias_p = jnp.pad(bias, (0, cout_pad - cout)).reshape(1, cout_pad)   # f32

    kernel = functools.partial(_gemm_bias_act_kernel, cout=cout, relu=relu)

    bytes_cdt = jnp.dtype(cdt).itemsize
    bytes_out = jnp.dtype(out_dtype).itemsize
    vmem_est = (2 * tm * k_pad * bytes_cdt        # double-buffered slab tiles
                + 2 * tm * cout * bytes_out       # double-buffered output tiles
                + k_pad * cout_pad * bytes_cdt    # resident weight
                + cout_pad * 4                    # resident bias
                + 2 * tm * cout_pad * 4           # f32 accumulator / epilogue temps
                + (4 << 20))                      # slack
    vmem_limit = int(min(max(vmem_est, 32 << 20), 64 << 20))

    out_flat = pl.pallas_call(
        kernel,
        out_shape=jax.ShapeDtypeStruct((m_pad, cout), out_dtype),
        grid_spec=pltpu.PrefetchScalarGridSpec(
            num_scalar_prefetch=0,
            grid=(n_m,),
            in_specs=[
                pl.BlockSpec((tm, k_pad), lambda i: (i, 0)),
                pl.BlockSpec((k_pad, cout_pad), lambda i: (0, 0)),    # VMEM-resident
                pl.BlockSpec((1, cout_pad), lambda i: (0, 0)),        # VMEM-resident
            ],
            out_specs=pl.BlockSpec((tm, cout), lambda i: (i, 0)),
        ),
        compiler_params=pltpu.CompilerParams(
            dimension_semantics=("parallel",),      # independent M tiles -> megacore
            vmem_limit_bytes=vmem_limit),
        cost_estimate=pl.CostEstimate(
            flops=2 * m_pad * k_pad * cout_pad,
            transcendentals=0,
            bytes_accessed=(m_pad * k_pad * bytes_cdt
                            + k_pad * cout_pad * bytes_cdt
                            + m_pad * cout * bytes_out)),
    )(x_col, w2d, bias_p)

    out = out_flat[:m_total].reshape(n, h_out, w_out, cout)
    return jnp.transpose(out, (0, 3, 1, 2))         # back to PyTorch's NCHW


def basic_conv(x_nchw, conv_w, bn_gamma=None, bn_beta=None, bn_mean=None, bn_var=None,
               conv_bias=None, *, stride=1, padding=0, relu=True, bn=True, eps=1e-5,
               compute_dtype=None, tile_m=None):
    """BasicConv forward: Conv2d (bias optional) -> BatchNorm2d (inference) -> ReLU.

    x_nchw: (N, Cin, H, W); conv_w: (Cout, Cin, KH, KW).
    compute_dtype: dtype fed to the MXU (default bfloat16 on every TPU generation);
                   accumulation and the BN/ReLU epilogue stay in f32.
    """
    return _basic_conv_impl(
        x_nchw, conv_w, bn_gamma, bn_beta, bn_mean, bn_var, conv_bias,
        stride=int(stride), padding=int(padding), relu=bool(relu), bn=bool(bn),
        eps=float(eps), compute_dtype=compute_dtype, tile_m=tile_m)


def _reference(x_nchw, conv_w, gamma, beta, mean, var, *,
               stride, padding, relu, bn, eps=1e-5):
    y = lax.conv_general_dilated(
        x_nchw, conv_w, window_strides=(stride, stride),
        padding=[(padding, padding), (padding, padding)],
        dimension_numbers=("NCHW", "OIHW", "NCHW"))
    if bn:
        s = (gamma / jnp.sqrt(var + eps)).reshape(1, -1, 1, 1)
        b = (beta - mean * gamma / jnp.sqrt(var + eps)).reshape(1, -1, 1, 1)
        y = y * s + b
    if relu:
        y = jnp.maximum(y, 0.0)
    return y


if __name__ == "__main__":
    # BasicConv(in_ch=4, out_ch=8, kernel_size=3, stride=1, padding=1)
    N, CIN, COUT, H, W, K = 2, 4, 8, 16, 16, 3

    key = jax.random.PRNGKey(0)
    kx, kw_, kg, kb, km, kv = jax.random.split(key, 6)

    x = jax.random.normal(kx, (N, CIN, H, W), jnp.float32)
    conv_w = jax.random.normal(kw_, (COUT, CIN, K, K), jnp.float32) * 0.1
    bn_gamma = 1.0 + 0.1 * jax.random.normal(kg, (COUT,), jnp.float32)
    bn_beta = 0.1 * jax.random.normal(kb, (COUT,), jnp.float32)
    bn_mean = 0.1 * jax.random.normal(km, (COUT,), jnp.float32)
    bn_var = jax.random.uniform(kv, (COUT,), jnp.float32, minval=0.5, maxval=1.5)

    # 1) 3x3 / stride 1 / pad 1, BN+ReLU; f32 MXU inputs, multi-tile M (strict tol).
    ref = _reference(x, conv_w, bn_gamma, bn_beta, bn_mean, bn_var,
                     stride=1, padding=1, relu=True, bn=True)
    out = basic_conv(x, conv_w, bn_gamma, bn_beta, bn_mean, bn_var,
                     stride=1, padding=1, relu=True, bn=True,
                     compute_dtype=jnp.float32, tile_m=128)
    out = jax.block_until_ready(out)
    assert out.shape == (N, COUT, H, W), out.shape
    assert jnp.allclose(out, ref, atol=1e-4, rtol=1e-4), \
        float(jnp.max(jnp.abs(out - ref)))

    # 2) default bf16 MXU inputs (f32 accumulation / epilogue), loose tolerance.
    out_bf = basic_conv(x, conv_w, bn_gamma, bn_beta, bn_mean, bn_var,
                        stride=1, padding=1, relu=True, bn=True)
    out_bf = jax.block_until_ready(out_bf)
    assert out_bf.shape == (N, COUT, H, W), out_bf.shape
    assert jnp.allclose(out_bf, ref, atol=1e-1, rtol=1e-1), \
        float(jnp.max(jnp.abs(out_bf - ref)))

    # 3) 1x1 conv, no BN / no ReLU path.
    w1 = jax.random.normal(kw_, (COUT, CIN, 1, 1), jnp.float32) * 0.1
    ref1 = _reference(x, w1, None, None, None, None,
                      stride=1, padding=0, relu=False, bn=False)
    out1 = basic_conv(x, w1, stride=1, padding=0, relu=False, bn=False,
                      compute_dtype=jnp.float32)
    out1 = jax.block_until_ready(out1)
    assert jnp.allclose(out1, ref1, atol=1e-4, rtol=1e-4), \
        float(jnp.max(jnp.abs(out1 - ref1)))

    # 4) stride-2 path + non-divisible M tiling (padded tail rows), strict tolerance.
    ref2 = _reference(x, conv_w, bn_gamma, bn_beta, bn_mean, bn_var,
                      stride=2, padding=1, relu=True, bn=True)
    out2 = basic_conv(x, conv_w, bn_gamma, bn_beta, bn_mean, bn_var,
                      stride=2, padding=1, relu=True, bn=True,
                      compute_dtype=jnp.float32, tile_m=48)
    out2 = jax.block_until_ready(out2)
    assert out2.shape == ref2.shape, (out2.shape, ref2.shape)
    assert jnp.allclose(out2, ref2, atol=1e-4, rtol=1e-4), \
        float(jnp.max(jnp.abs(out2 - ref2)))

    print("KERNEL_OK")
</pallas_src>

<mosaic_0001>
module attributes {stable_mosaic.version = 11 : i64} {
  func.func @_gemm_bias_act_kernel(%arg0: i32, %arg1: memref<128x40xf32, #tpu.memory_space<vmem>>, %arg2: memref<40x128xf32, #tpu.memory_space<vmem>>, %arg3: memref<1x128xf32, #tpu.memory_space<vmem>>, %arg4: memref<128x8xf32, #tpu.memory_space<vmem>>) attributes {dimension_semantics = [#tpu.dimension_semantics<parallel>], iteration_bounds = array<i64: 4>, scalar_prefetch = 0 : i64, scratch_operands = 0 : i64, tpu.core_type = #tpu.core_type<tc>, window_params = [{transform_indices = @transform_0, window_bounds = array<i64: 128, 40>}, {pipeline_mode = #tpu.pipeline_mode<synchronous>, transform_indices = @transform_1, window_bounds = array<i64: 40, 128>}, {pipeline_mode = #tpu.pipeline_mode<synchronous>, transform_indices = @transform_2, window_bounds = array<i64: 1, 128>}, {transform_indices = @transform_3, window_bounds = array<i64: 128, 8>}]} {
    %c0 = arith.constant 0 : index
    %c0_0 = arith.constant 0 : index
    %0 = vector.load %arg1[%c0, %c0_0] : memref<128x40xf32, #tpu.memory_space<vmem>>, vector<128x40xf32>
    %c0_1 = arith.constant 0 : index
    %c0_2 = arith.constant 0 : index
    %1 = vector.load %arg2[%c0_1, %c0_2] : memref<40x128xf32, #tpu.memory_space<vmem>>, vector<40x128xf32>
    %cst = arith.constant dense<0.000000e+00> : vector<128x128xf32>
    %2 = tpu.matmul %0, %1, %cst {dimension_numbers = #tpu.dot_dimension_numbers<[1], [0], [0], [1], [0, 0, 1, 1], [], []>} : vector<128x40xf32>, vector<40x128xf32>, vector<128x128xf32> -> vector<128x128xf32>
    %c0_3 = arith.constant 0 : index
    %c0_4 = arith.constant 0 : index
    %3 = vector.load %arg3[%c0_3, %c0_4] : memref<1x128xf32, #tpu.memory_space<vmem>>, vector<1x128xf32>
    %4 = vector.broadcast %3 : vector<1x128xf32> to vector<128x128xf32>
    %5 = arith.addf %2, %4 : vector<128x128xf32>
    %cst_5 = arith.constant 0.000000e+00 : f32
    %6 = vector.broadcast %cst_5 : f32 to vector<128x128xf32>
    %7 = arith.maximumf %5, %6 : vector<128x128xf32>
    %8 = vector.extract_strided_slice %7 {offsets = [0, 0], sizes = [128, 8], strides = [1, 1]} : vector<128x128xf32> to vector<128x8xf32>
    %c0_6 = arith.constant 0 : index
    %c0_7 = arith.constant 0 : index
    %9 = vector.load %arg4[%c0_6, %c0_7] : memref<128x8xf32, #tpu.memory_space<vmem>>, vector<128x8xf32>
    tpu.vector_store %arg4[%c0_6, %c0_7], %8 {strides = array<i32>} : memref<128x8xf32, #tpu.memory_space<vmem>>, vector<128x8xf32>,
    return
  }
  func.func @transform_0(%arg0: i32) -> (i32, i32) {
    %c0_i32 = arith.constant 0 : i32
    %c0_i32_0 = arith.constant 0 : i32
    return %arg0, %c0_i32 : i32, i32
  }
  func.func @transform_1(%arg0: i32) -> (i32, i32) {
    %c0_i32 = arith.constant 0 : i32
    %c0_i32_0 = arith.constant 0 : i32
    %c0_i32_1 = arith.constant 0 : i32
    return %c0_i32, %c0_i32_0 : i32, i32
  }
  func.func @transform_2(%arg0: i32) -> (i32, i32) {
    %c0_i32 = arith.constant 0 : i32
    %c0_i32_0 = arith.constant 0 : i32
    %c0_i32_1 = arith.constant 0 : i32
    return %c0_i32, %c0_i32_0 : i32, i32
  }
  func.func @transform_3(%arg0: i32) -> (i32, i32) {
    %c0_i32 = arith.constant 0 : i32
    %c0_i32_0 = arith.constant 0 : i32
    return %arg0, %c0_i32 : i32, i32
  }
}

</mosaic_0001>

<llo_original>
// kernel: _basic_conv_impl.1
$region0: #{_basic_conv_impl.1}
  #allocation0 [shape = 'u32[]', space=smem, size = 0x4, offset = 0x4, fixed_abs, tag = 'smem constant byte address 0x4 - core index']
  #allocation1 [shape = 'u32[144,128]{1,0:T(1,128)}', space=vmem, size = 0x12000, scoped, tag = 'internal scratch']
  %s0 = inlined_call_operand.vmem [shape: f32[512,40], index: 0, kind: input, shape index: {}]
  %s1 = inlined_call_operand.vmem [shape: f32[40,128], index: 1, kind: input, shape index: {}]
  %s2 = inlined_call_operand.vmem [shape: f32[1,128], index: 2, kind: input, shape index: {}]
  %s3 = inlined_call_operand.vmem [shape: f32[512,8], index: 3, kind: output, shape index: {}]
  %s4 = sld [smem:[#allocation0]]
  $region45: #{_basic_conv_impl.1} parent=0
    _
  %s6 = ssub.s32 1, %s4
  %s7 = scalar_select 0, %s6, %s4
  loop: start=0, step=1, limit=6
  $region2: #{_basic_conv_impl.1} parent=0 // loop_pre_header
    _
  $region3: #{_basic_conv_impl.1} parent=0 // loop_header
    %s9 = sphi 0, %s13
    %p10 = scmp.ge.s32.totalorder %s9, 6
    %s19 = sphi 0, %s21
    %s22 = sphi 0, %s19
    %s23 = sphi 0, %s22
    %s39 = sphi 0, %s23
    %s43 = sphi 0, %s43
    %s45 = sphi 0, %s43
    %s46 = sphi 0, %s45
    %s60 = sphi 0, %s46
    %s64 = sphi 0, %s64
    %s66 = sphi 0, %s64
    %s67 = sphi 0, %s66
    %s81 = sphi 0, %s67
    %s87 = sphi 0, %s89
    %s90 = sphi 0, %s87
    %s91 = sphi 0, %s90
    %s107 = sphi 0, %s91
  $region4: #{_basic_conv_impl.1} parent=0 // loop_header_branch
    %12 = sbr.rel (%p10) target = $region8
  $region5: #{_basic_conv_impl.1} parent=0 // loop_body
    %s14 = ssub.s32 %s9, 1
    %s15 = ssub.s32 %s9, 2
    %s16 = sadd.s32 %s9, 1
    %s17 = ssub.s32 %s9, %s16
    %p18 = scmp.eq.s32.totalorder %s17, 0
    %s20 = sadd.s32 %s19, 1
    %s21 = scalar_select %p18, %s19, %s20
    %p24 = pneg %p18
    %p25 = scmp.eq.s32.totalorder %s9, 3
    %p26 = por %p24, %p25
    %p27 = scmp.ne.s32.totalorder %s19, %s22
    %p28 = scmp.eq.s32.totalorder %s9, 0
    %p29 = por %p27, %p28
    %p30 = scmp.ne.s32.totalorder %s19, %s22
    %p31 = scmp.eq.s32.totalorder %s14, 3
    %p32 = por %p30, %p31
    %p33 = scmp.ne.s32.totalorder %s22, %s23
    %p34 = scmp.eq.s32.totalorder %s14, 0
    %p35 = por %p33, %p34
    %p36 = scmp.ne.s32.totalorder %s22, %s23
    %p37 = scmp.eq.s32.totalorder %s15, 3
    %p38 = por %p36, %p37
    %p40 = scmp.ne.s32.totalorder %s23, %s39
    %p41 = scmp.eq.s32.totalorder %s15, 0
    %p42 = por %p40, %p41
    %s44 = sadd.s32 %s43, 1
    %p47 = scmp.eq.s32.totalorder %s9, 3
    %p48 = scmp.ne.s32.totalorder %s43, %s45
    %p49 = scmp.eq.s32.totalorder %s9, 0
    %p50 = por %p48, %p49
    %p51 = scmp.ne.s32.totalorder %s43, %s45
    %p52 = scmp.eq.s32.totalorder %s14, 3
    %p53 = por %p51, %p52
    %p54 = scmp.ne.s32.totalorder %s45, %s46
    %p55 = scmp.eq.s32.totalorder %s14, 0
    %p56 = por %p54, %p55
    %p57 = scmp.ne.s32.totalorder %s45, %s46
    %p58 = scmp.eq.s32.totalorder %s15, 3
    %p59 = por %p57, %p58
    %p61 = scmp.ne.s32.totalorder %s46, %s60
    %p62 = scmp.eq.s32.totalorder %s15, 0
    %p63 = por %p61, %p62
    %s65 = sadd.s32 %s64, 1
    %p68 = scmp.eq.s32.totalorder %s9, 3
    %p69 = scmp.ne.s32.totalorder %s64, %s66
    %p70 = scmp.eq.s32.totalorder %s9, 0
    %p71 = por %p69, %p70
    %p72 = scmp.ne.s32.totalorder %s64, %s66
    %p73 = scmp.eq.s32.totalorder %s14, 3
    %p74 = por %p72, %p73
    %p75 = scmp.ne.s32.totalorder %s66, %s67
    %p76 = scmp.eq.s32.totalorder %s14, 0
    %p77 = por %p75, %p76
    %p78 = scmp.ne.s32.totalorder %s66, %s67
    %p79 = scmp.eq.s32.totalorder %s15, 3
    %p80 = por %p78, %p79
    %p82 = scmp.ne.s32.totalorder %s67, %s81
    %p83 = scmp.eq.s32.totalorder %s15, 0
    %p84 = por %p82, %p83
    %s85 = ssub.s32 %s9, %s16
    %p86 = scmp.eq.s32.totalorder %s85, 0
    %s88 = sadd.s32 %s87, 1
    %s89 = scalar_select %p86, %s87, %s88
    %p92 = pneg %p86
    %p93 = scmp.eq.s32.totalorder %s9, 3
    %p94 = por %p92, %p93
    %p95 = scmp.ne.s32.totalorder %s87, %s90
    %p96 = scmp.eq.s32.totalorder %s9, 0
    %p97 = por %p95, %p96
    %p98 = scmp.ne.s32.totalorder %s87, %s90
    %p99 = scmp.eq.s32.totalorder %s14, 3
    %p100 = por %p98, %p99
    %p101 = scmp.ne.s32.totalorder %s90, %s91
    %p102 = scmp.eq.s32.totalorder %s14, 0
    %p103 = por %p101, %p102
    %p104 = scmp.ne.s32.totalorder %s90, %s91
    %p105 = scmp.eq.s32.totalorder %s15, 3
    %p106 = por %p104, %p105
    %p108 = scmp.ne.s32.totalorder %s91, %s107
    %p109 = scmp.eq.s32.totalorder %s15, 0
    %p110 = por %p108, %p109
    %p111 = scmp.le.s32.totalorder 1, %s9
    %p112 = scmp.lt.s32.totalorder %s9, 5
    %p113 = pnand %p111, %p112
    %p114 = pneg %p113
    // Predicated region
    $region9: #{_basic_conv_impl.1} parent=5 // pred_check
      _
    $region10: #{_basic_conv_impl.1} parent=5 // pred_check_branch
      %116 = sbr.rel (%p113) target = $region12
    $region11: #{_basic_conv_impl.1} parent=5 // pred_region
      %s117 = ssub.s32 %s9, 1
      // Predicated region
      $region13: #{_basic_conv_impl.1} parent=11 // pred_check
        %p118 = pneg %p56
      $region14: #{_basic_conv_impl.1} parent=11 // pred_check_branch
        %120 = sbr.rel (%p118) target = $region16
      $region15: #{_basic_conv_impl.1} parent=11 // pred_region
        _
      $region16: #{_basic_conv_impl.1} parent=11 // pred_fallthru
        _
      // Predicated region
      $region17: #{_basic_conv_impl.1} parent=11 // pred_check
        %p121 = pneg %p77
      $region18: #{_basic_conv_impl.1} parent=11 // pred_check_branch
        %123 = sbr.rel (%p121) target = $region20
      $region19: #{_basic_conv_impl.1} parent=11 // pred_region
        _
      $region20: #{_basic_conv_impl.1} parent=11 // pred_fallthru
        _
    $region12: #{_basic_conv_impl.1} parent=5 // pred_fallthru
      _
    %p124 = scmp.lt.s32.totalorder %s9, 4
    // Predicated region
    $region21: #{_basic_conv_impl.1} parent=5 // pred_check
      %p125 = pneg %p124
    $region22: #{_basic_conv_impl.1} parent=5 // pred_check_branch
      %127 = sbr.rel (%p125) target = $region24
    $region23: #{_basic_conv_impl.1} parent=5 // pred_region
      // Predicated region
      $region25: #{_basic_conv_impl.1} parent=23 // pred_check
        %p128 = pneg %p29
      $region26: #{_basic_conv_impl.1} parent=23 // pred_check_branch
        %130 = sbr.rel (%p128) target = $region28
      $region27: #{_basic_conv_impl.1} parent=23 // pred_region
        %s131 = smul.u32 16, %s9
        %p132 = scmp.lt.s32.totalorder %s131, 63
        %s133 = scalar_select %p132, %s131, 63
        %s134 = smul.addr %s133, 8
        %s135 = scalar_lea.vmem %s0, %s134
        %s136 = smul.u32 16, %s9
      $region28: #{_basic_conv_impl.1} parent=23 // pred_fallthru
        _
    $region24: #{_basic_conv_impl.1} parent=5 // pred_fallthru
      _
    %p137 = scmp.le.s32.totalorder 1, %s9
    %p138 = scmp.lt.s32.totalorder %s9, 5
    %p139 = pnand %p137, %p138
    %p140 = pneg %p139
    // Predicated region
    $region29: #{_basic_conv_impl.1} parent=5 // pred_check
      _
    $region30: #{_basic_conv_impl.1} parent=5 // pred_check_branch
      %142 = sbr.rel (%p139) target = $region32
    $region31: #{_basic_conv_impl.1} parent=5 // pred_region
      %s143 = ssub.s32 %s9, 1
      %s144 = smul.u32 16, %s14
      %p145 = scmp.lt.s32.totalorder %s144, 63
      %s146 = scalar_select %p145, %s144, 63
      %s147 = smul.addr %s146, 8
      %s148 = scalar_lea.vmem %s0, %s147
      %p149 = pneg %p35
      %p150 = pneg %p32
      %p151 = pneg %p56
      %p152 = pneg %p53
      %p153 = pneg %p77
      %p154 = pneg %p74
      %p155 = pneg %p103
      %p156 = pneg %p100
      %s157 = smul.u32 16, %s14
      %p158 = scmp.lt.s32.totalorder %s157, 63
      %s159 = scalar_select %p158, %s157, 63
      %s160 = smul.addr %s159, 8
      %s161 = scalar_lea.vmem %s3, %s160
      %s162 = smul.u32 16, %s14
      %p163 = scmp.lt.s32.totalorder %s162, 63
      %s164 = scalar_select %p163, %s162, 63
      %s165 = smul.addr %s164, 8
      %s166 = scalar_lea.vmem %s0, %s165
      %s167 = smul.u32 16, %s14
      %s168 = smul.u32 16, %s14
      %p169 = scmp.lt.s32.totalorder %s168, 63
      %s170 = scalar_select %p169, %s168, 63
      %s171 = smul.addr %s170, 8
      %s172 = scalar_lea.vmem %s3, %s171
      %s173 = smul.u32 16, %s14
      %v174 = vld [vmem:[%s166] sm:$0xff]
      %v175 = vld [vmem:[%s166 + $0x8] sm:$0xff]
      %v176 = vld [vmem:[%s166 + $0x10] sm:$0xff]
      %v177 = vld [vmem:[%s166 + $0x18] sm:$0xff]
      %v178 = vld [vmem:[%s166 + $0x20] sm:$0xff]
      %v179 = vld [vmem:[%s166 + $0x28] sm:$0xff]
      %v180 = vld [vmem:[%s166 + $0x30] sm:$0xff]
      %v181 = vld [vmem:[%s166 + $0x38] sm:$0xff]
      %v182 = vld [vmem:[%s166 + $0x40] sm:$0xff]
      %v183 = vld [vmem:[%s166 + $0x48] sm:$0xff]
      %v184 = vld [vmem:[%s166 + $0x50] sm:$0xff]
      %v185 = vld [vmem:[%s166 + $0x58] sm:$0xff]
      %v186 = vld [vmem:[%s166 + $0x60] sm:$0xff]
      %v187 = vld [vmem:[%s166 + $0x68] sm:$0xff]
      %v188 = vld [vmem:[%s166 + $0x70] sm:$0xff]
      %v189 = vld [vmem:[%s166 + $0x78] sm:$0xff]
      %v190 = vld [vmem:[%s1] sm:$0xff]
      %v191 = vld [vmem:[%s1 + $0x8] sm:$0xff]
      %v192 = vld [vmem:[%s1 + $0x10] sm:$0xff]
      %v193 = vld [vmem:[%s1 + $0x18] sm:$0xff]
      %v194 = vld [vmem:[%s1 + $0x20] sm:$0xff]
      %v195 = vld [vmem:[%s2] sm:$0x1]
      %v197 = vlaneseq
      %v198 = vshrl.u32 %v197, 7
      %v199 = vsub.s32 0, %v198
      %v200 = vrot.slane %v195, %v199
      %vm202 = vcmask 326656
      %v204 = vsel %vm202, %v174, 0
      %v207 = vsel %vm202, %v175, 0
      %v210 = vsel %vm202, %v176, 0
      %v213 = vsel %vm202, %v177, 0
      %v216 = vsel %vm202, %v178, 0
      %v219 = vsel %vm202, %v179, 0
      %v222 = vsel %vm202, %v180, 0
      %v225 = vsel %vm202, %v181, 0
      %v228 = vsel %vm202, %v182, 0
      %v231 = vsel %vm202, %v183, 0
      %v234 = vsel %vm202, %v184, 0
      %v237 = vsel %vm202, %v185, 0
      %v240 = vsel %vm202, %v186, 0
      %v243 = vsel %vm202, %v187, 0
      %v246 = vsel %vm202, %v188, 0
      %v249 = vsel %vm202, %v189, 0
      %251 = vmatprep.subr.mxu0 0.0
      %252 = vmatpush1.msra.mxu0 0.0
      %253 = vmatprep.subr.mxu0 0.0
      %254 = vmatpush1.msra.mxu0 0.0
      %255 = vmatprep.subr.mxu0 0.0
      %256 = vmatpush1.msra.mxu0 0.0
      %257 = vmatprep.subr.mxu0 0.0
      %258 = vmatpush1.msra.mxu0 0.0
      %259 = vmatprep.subr.mxu0 0.0
      %260 = vmatpush1.msra.mxu0 0.0
      %261 = vmatprep.subr.mxu0 0.0
      %262 = vmatpush1.msra.mxu0 0.0
      %263 = vmatprep.subr.mxu0 0.0
      %264 = vmatpush1.msra.mxu0 0.0
      %265 = vmatprep.subr.mxu0 0.0
      %266 = vmatpush1.msra.mxu0 0.0
      %267 = vmatprep.subr.mxu0 0.0
      %268 = vmatpush1.msra.mxu0 0.0
      %269 = vmatprep.subr.mxu0 0.0
      %270 = vmatpush1.msra.mxu0 0.0
      %271 = vmatprep.subr.mxu0 0.0
      %272 = vmatpush1.msra.mxu0 0.0
      %273 = vmatprep.subr.mxu0 0.0
      %274 = vmatpush1.msra.mxu0 %v194
      %275 = vmatprep.subr.mxu0 0.0
      %276 = vmatpush1.msra.mxu0 %v193
      %277 = vmatprep.subr.mxu0 0.0
      %278 = vmatpush1.msra.mxu0 %v192
      %279 = vmatprep.subr.mxu0 0.0
      %280 = vmatpush1.msra.mxu0 %v191
      %281 = vmatprep.subr.mxu0 0.0
      %282 = vmatpush1.msra.mxu0 %v190
      %283 = vmatprep.subr.mxu0 0.0
      %284 = vmatpush2.msra.mxu0 0.0
      %285 = vmatprep.subr.mxu0 0.0
      %286 = vmatpush2.msra.mxu0 0.0
      %287 = vmatprep.subr.mxu0 0.0
      %288 = vmatpush2.msra.mxu0 0.0
      %289 = vmatprep.subr.mxu0 0.0
      %290 = vmatpush2.msra.mxu0 0.0
      %291 = vmatprep.subr.mxu0 0.0
      %292 = vmatpush2.msra.mxu0 0.0
      %293 = vmatprep.subr.mxu0 0.0
      %294 = vmatpush2.msra.mxu0 0.0
      %295 = vmatprep.subr.mxu0 0.0
      %296 = vmatpush2.msra.mxu0 0.0
      %297 = vmatprep.subr.mxu0 0.0
      %298 = vmatpush2.msra.mxu0 0.0
      %299 = vmatprep.subr.mxu0 0.0
      %300 = vmatpush2.msra.mxu0 0.0
      %301 = vmatprep.subr.mxu0 0.0
      %302 = vmatpush2.msra.mxu0 0.0
      %303 = vmatprep.subr.mxu0 0.0
      %304 = vmatpush2.msra.mxu0 0.0
      %305 = vmatprep.subr.mxu0 0.0
      %306 = vmatpush2.msra.mxu0 0.0
      %307 = vmatprep.subr.mxu0 0.0
      %308 = vmatpush2.msra.mxu0 0.0
      %309 = vmatprep.subr.mxu0 0.0
      %310 = vmatpush2.msra.mxu0 0.0
      %311 = vmatprep.subr.mxu0 0.0
      %312 = vmatpush2.msra.mxu0 0.0
      %313 = vmatprep.subr.mxu0 0.0
      %314 = vmatpush2.msra.mxu0 0.0
      %315 = vmatprep.mubr.f32.mxu0 0.0
      %316 = vmatmul.mubr.f32.gmra.mxu0 %v204
      %v317 = vpop.f32.mrf.mxu0
      %v318 = vadd.f32 %v200, %v317
      %v319 = vpop.f32.mrf.mxu0
      %320 = vmatprep.mubr.f32.mxu0 0.0
      %321 = vmatmul.mubr.f32.gmra.mxu0 %v207
      %v322 = vpop.f32.mrf.mxu0
      %v323 = vadd.f32 %v200, %v322
      %v324 = vpop.f32.mrf.mxu0
      %325 = vmatprep.mubr.f32.mxu0 0.0
      %326 = vmatmul.mubr.f32.gmra.mxu0 %v210
      %v327 = vpop.f32.mrf.mxu0
      %v328 = vadd.f32 %v200, %v327
      %v329 = vpop.f32.mrf.mxu0
      %330 = vmatprep.mubr.f32.mxu0 0.0
      %331 = vmatmul.mubr.f32.gmra.mxu0 %v213
      %v332 = vpop.f32.mrf.mxu0
      %v333 = vadd.f32 %v200, %v332
      %v334 = vpop.f32.mrf.mxu0
      %335 = vmatprep.mubr.f32.mxu0 0.0
      %336 = vmatmul.mubr.f32.gmra.mxu0 %v216
      %v337 = vpop.f32.mrf.mxu0
      %v338 = vadd.f32 %v200, %v337
      %v339 = vpop.f32.mrf.mxu0
      %340 = vmatprep.mubr.f32.mxu0 0.0
      %341 = vmatmul.mubr.f32.gmra.mxu0 %v219
      %v342 = vpop.f32.mrf.mxu0
      %v343 = vadd.f32 %v200, %v342
      %v344 = vpop.f32.mrf.mxu0
      %345 = vmatprep.mubr.f32.mxu0 0.0
      %346 = vmatmul.mubr.f32.gmra.mxu0 %v222
      %v347 = vpop.f32.mrf.mxu0
      %v348 = vadd.f32 %v200, %v347
      %v349 = vpop.f32.mrf.mxu0
      %350 = vmatprep.mubr.f32.mxu0 0.0
      %351 = vmatmul.mubr.f32.gmra.mxu0 %v225
      %v352 = vpop.f32.mrf.mxu0
      %v353 = vadd.f32 %v200, %v352
      %v354 = vpop.f32.mrf.mxu0
      %355 = vmatprep.mubr.f32.mxu0 0.0
      %356 = vmatmul.mubr.f32.gmra.mxu0 %v228
      %v357 = vpop.f32.mrf.mxu0
      %v358 = vadd.f32 %v200, %v357
      %v359 = vpop.f32.mrf.mxu0
      %360 = vmatprep.mubr.f32.mxu0 0.0
      %361 = vmatmul.mubr.f32.gmra.mxu0 %v231
      %v362 = vpop.f32.mrf.mxu0
      %v363 = vadd.f32 %v200, %v362
      %v364 = vpop.f32.mrf.mxu0
      %365 = vmatprep.mubr.f32.mxu0 0.0
      %366 = vmatmul.mubr.f32.gmra.mxu0 %v234
      %v367 = vpop.f32.mrf.mxu0
      %v368 = vadd.f32 %v200, %v367
      %v369 = vpop.f32.mrf.mxu0
      %370 = vmatprep.mubr.f32.mxu0 0.0
      %371 = vmatmul.mubr.f32.gmra.mxu0 %v237
      %v372 = vpop.f32.mrf.mxu0
      %v373 = vadd.f32 %v200, %v372
      %v374 = vpop.f32.mrf.mxu0
      %375 = vmatprep.mubr.f32.mxu0 0.0
      %376 = vmatmul.mubr.f32.gmra.mxu0 %v240
      %v377 = vpop.f32.mrf.mxu0
      %v378 = vadd.f32 %v200, %v377
      %v379 = vpop.f32.mrf.mxu0
      %380 = vmatprep.mubr.f32.mxu0 0.0
      %381 = vmatmul.mubr.f32.gmra.mxu0 %v243
      %v382 = vpop.f32.mrf.mxu0
      %v383 = vadd.f32 %v200, %v382
      %v384 = vpop.f32.mrf.mxu0
      %385 = vmatprep.mubr.f32.mxu0 0.0
      %386 = vmatmul.mubr.f32.gmra.mxu0 %v246
      %v387 = vpop.f32.mrf.mxu0
      %v388 = vadd.f32 %v200, %v387
      %v389 = vpop.f32.mrf.mxu0
      %390 = vmatprep.mubr.f32.mxu0 0.0
      %391 = vmatmul.mubr.f32.gmra.mxu0 %v249
      %v392 = vpop.f32.mrf.mxu0
      %v393 = vadd.f32 %v200, %v392
      %v394 = vpop.f32.mrf.mxu0
      %395 = vdwg.mxu0
      %v396 = vmax.f32 %v318, 0.0
      %v397 = vmax.f32 %v323, 0.0
      %v398 = vmax.f32 %v328, 0.0
      %v399 = vmax.f32 %v333, 0.0
      %v400 = vmax.f32 %v338, 0.0
      %v401 = vmax.f32 %v343, 0.0
      %v402 = vmax.f32 %v348, 0.0
      %v403 = vmax.f32 %v353, 0.0
      %v404 = vmax.f32 %v358, 0.0
      %v405 = vmax.f32 %v363, 0.0
      %v406 = vmax.f32 %v368, 0.0
      %v407 = vmax.f32 %v373, 0.0
      %v408 = vmax.f32 %v378, 0.0
      %v409 = vmax.f32 %v383, 0.0
      %v410 = vmax.f32 %v388, 0.0
      %v411 = vmax.f32 %v393, 0.0
      %vm412 = vcmask 64512
      %413 = vst.msk [vmem:[%s172] sm:$0xff] %vm412, %v396
      %414 = vst.msk [vmem:[%s172 + $0x8] sm:$0xff] %vm412, %v397
      %415 = vst.msk [vmem:[%s172 + $0x10] sm:$0xff] %vm412, %v398
      %416 = vst.msk [vmem:[%s172 + $0x18] sm:$0xff] %vm412, %v399
      %417 = vst.msk [vmem:[%s172 + $0x20] sm:$0xff] %vm412, %v400
      %418 = vst.msk [vmem:[%s172 + $0x28] sm:$0xff] %vm412, %v401
      %419 = vst.msk [vmem:[%s172 + $0x30] sm:$0xff] %vm412, %v402
      %420 = vst.msk [vmem:[%s172 + $0x38] sm:$0xff] %vm412, %v403
      %421 = vst.msk [vmem:[%s172 + $0x40] sm:$0xff] %vm412, %v404
      %422 = vst.msk [vmem:[%s172 + $0x48] sm:$0xff] %vm412, %v405
      %423 = vst.msk [vmem:[%s172 + $0x50] sm:$0xff] %vm412, %v406
      %424 = vst.msk [vmem:[%s172 + $0x58] sm:$0xff] %vm412, %v407
      %425 = vst.msk [vmem:[%s172 + $0x60] sm:$0xff] %vm412, %v408
      %426 = vst.msk [vmem:[%s172 + $0x68] sm:$0xff] %vm412, %v409
      %427 = vst.msk [vmem:[%s172 + $0x70] sm:$0xff] %vm412, %v410
      %428 = vst.msk [vmem:[%s172 + $0x78] sm:$0xff] %vm412, %v411
      %s429 = smul.u32 16, %s14
      %p430 = scmp.lt.s32.totalorder %s429, 63
      %s431 = scalar_select %p430, %s429, 63
      %s432 = smul.addr %s431, 8
      %s433 = scalar_lea.vmem %s3, %s432
      // Predicated region
      $region33: #{_basic_conv_impl.1} parent=31 // pred_check
        %p434 = pneg %p100
      $region34: #{_basic_conv_impl.1} parent=31 // pred_check_branch
        %436 = sbr.rel (%p434) target = $region36
      $region35: #{_basic_conv_impl.1} parent=31 // pred_region
        %s437 = smul.u32 16, %s14
      $region36: #{_basic_conv_impl.1} parent=31 // pred_fallthru
        _
    $region32: #{_basic_conv_impl.1} parent=5 // pred_fallthru
      _
    %p438 = scmp.le.s32.totalorder 2, %s9
    // Predicated region
    $region37: #{_basic_conv_impl.1} parent=5 // pred_check
      %p439 = pneg %p438
    $region38: #{_basic_conv_impl.1} parent=5 // pred_check_branch
      %441 = sbr.rel (%p439) target = $region40
    $region39: #{_basic_conv_impl.1} parent=5 // pred_region
      %s442 = ssub.s32 %s9, 2
      // Predicated region
      $region41: #{_basic_conv_impl.1} parent=39 // pred_check
        %p443 = pneg %p106
      $region42: #{_basic_conv_impl.1} parent=39 // pred_check_branch
        %445 = sbr.rel (%p443) target = $region44
      $region43: #{_basic_conv_impl.1} parent=39 // pred_region
        %s446 = smul.u32 16, %s15
        %p447 = scmp.lt.s32.totalorder %s446, 63
        %s448 = scalar_select %p447, %s446, 63
        %s449 = smul.addr %s448, 8
        %s450 = scalar_lea.vmem %s3, %s449
      $region44: #{_basic_conv_impl.1} parent=39 // pred_fallthru
        _
    $region40: #{_basic_conv_impl.1} parent=5 // pred_fallthru
      _
  $region6: #{_basic_conv_impl.1} parent=0 // loop_footer
    %s13 = sadd.s32 1, %s9
  $region7: #{_basic_conv_impl.1} parent=0 // loop_footer_branch
    %8 = sbr.rel target = $region3
  $region8: #{_basic_conv_impl.1} parent=0 // loop_exit
    _

</llo_original>
